<compile_context>
chip_gen: v7x
topology: tpu7x:2x2x1
jax: 0.10.0
libtpu: 0.0.40
codegen_flags: <defaults>
</compile_context>

<pallas_src>
import jax
import jax.numpy as jnp
from jax.experimental import pallas as pl
from jax.experimental.pallas import tpu as pltpu


def _round_up(x, m):
    return ((x + m - 1) // m) * m


def _seq_peptide_kernel(seq_ref, w1_ref, b1_ref, w23_ref, b23_ref, out_ref):
    # (TB, L) f32 activations; weights bf16, biases f32.
    s = seq_ref[...]                                            # (TB, L) f32

    # Linear(max_length -> 512) + ReLU.  bf16 matmul inputs, f32 accumulation;
    # bias-add / ReLU stay in f32.
    h = jnp.dot(s.astype(jnp.bfloat16), w1_ref[...],
                preferred_element_type=jnp.float32)             # (TB, 512) f32
    h = jnp.maximum(h + b1_ref[...], 0.0)

    # Fused Linear(512 -> 128) o seq_fc Linear(128 -> classes), unpadded N.
    y = jnp.dot(h.astype(jnp.bfloat16), w23_ref[...],
                preferred_element_type=jnp.float32)             # (TB, classes) f32
    out_ref[...] = (y + b23_ref[...]).astype(out_ref.dtype)     # narrow store


def prepare_fused_params(params):
    """Fold seq_fc into the second Linear; cast weights to bf16."""
    w1, b1, w2, b2, w3, b3 = params
    w23 = w2 @ w3                                   # (512, classes) f32
    b23 = b2 @ w3 + b3                              # (1, classes)  f32
    return (w1.astype(jnp.bfloat16), b1.astype(jnp.float32),
            w23.astype(jnp.bfloat16), b23.astype(jnp.float32))


def _pick_batch_tile(B):
    """Batch tile: big (<=1024) to amortize per-step overhead, multiple of 8
    sublanes; keep >= 2 grid steps for moderate B so v7x's 2nd TC gets work."""
    if B <= 8:
        return _round_up(max(B, 1), 8)
    return min(1024, _round_up((B + 1) // 2, 8))


@jax.jit
def seq_peptide_forward(seq, fused_params):
    """seq: (B, 1, max_length) or (B, max_length) float32."""
    if seq.ndim == 3:
        seq = jnp.squeeze(seq, axis=1)              # squeeze(1) as in PyTorch
    B, L = seq.shape
    w1, b1, w23, b23 = fused_params
    H1 = w1.shape[1]
    classes = w23.shape[1]

    TB = _pick_batch_tile(B)
    nb = pl.cdiv(B, TB)                             # ragged last block: no jnp.pad

    bytes_accessed = (seq.size * 4 + w1.size * 2 + b1.size * 4
                      + w23.size * 2 + b23.size * 4 + B * classes * 4)

    out = pl.pallas_call(
        _seq_peptide_kernel,
        out_shape=jax.ShapeDtypeStruct((B, classes), jnp.float32),
        grid=(nb,),
        in_specs=[
            pl.BlockSpec((TB, L), lambda i: (i, 0)),            # batch-tiled input
            pl.BlockSpec(w1.shape, lambda i: (0, 0)),           # weights stay
            pl.BlockSpec(b1.shape, lambda i: (0, 0)),           # VMEM-resident
            pl.BlockSpec(w23.shape, lambda i: (0, 0)),          # across the grid
            pl.BlockSpec(b23.shape, lambda i: (0, 0)),
        ],
        out_specs=pl.BlockSpec((TB, classes), lambda i: (i, 0)),  # unpadded store
        compiler_params=pltpu.CompilerParams(
            dimension_semantics=("parallel",)),                 # megacore / v7x
        cost_estimate=pl.CostEstimate(
            flops=2 * B * (L * H1 + H1 * classes),
            transcendentals=0,
            bytes_accessed=bytes_accessed),
    )(seq, w1, b1, w23, b23)

    return out


def init_params(key, max_length=30, hidden_dim=128, out_dim=128, classes=6):
    """Deterministic parameter init (PyTorch-Linear-style uniform bounds)."""
    ks = jax.random.split(key, 6)

    def lin(kw, kb, fan_in, fan_out):
        bound = 1.0 / jnp.sqrt(fan_in)
        w = jax.random.uniform(kw, (fan_in, fan_out), jnp.float32, -bound, bound)
        b = jax.random.uniform(kb, (1, fan_out), jnp.float32, -bound, bound)
        return w, b

    w1, b1 = lin(ks[0], ks[1], max_length, hidden_dim * 4)   # Linear(30, 512)
    w2, b2 = lin(ks[2], ks[3], hidden_dim * 4, out_dim)      # Linear(512, 128)
    w3, b3 = lin(ks[4], ks[5], out_dim, classes)             # seq_fc Linear(128, 6)
    return (w1, b1, w2, b2, w3, b3)


def reference_forward(seq, params):
    """Exact f32 reference (unfused, unquantized) — PyTorch-equivalent."""
    if seq.ndim == 3:
        seq = jnp.squeeze(seq, axis=1)
    w1, b1, w2, b2, w3, b3 = params
    h = jnp.maximum(seq @ w1 + b1, 0.0)
    e = h @ w2 + b2
    return e @ w3 + b3


def quantized_reference_forward(seq, fused_params):
    """Reference matching the kernel's bf16 weight/activation rounding."""
    if seq.ndim == 3:
        seq = jnp.squeeze(seq, axis=1)
    w1, b1, w23, b23 = fused_params
    s = seq.astype(jnp.bfloat16).astype(jnp.float32)
    h = jnp.maximum(s @ w1.astype(jnp.float32) + b1, 0.0)
    h = h.astype(jnp.bfloat16).astype(jnp.float32)
    return h @ w23.astype(jnp.float32) + b23


if __name__ == "__main__":
    key = jax.random.PRNGKey(0)
    k_seq, k_vox, k_par = jax.random.split(key, 3)

    B, max_length, classes = 2, 30, 6
    # x = (vox, seq); vox is unused by the SEQPeptide(q_encoder='mlp') forward.
    vox = jax.random.normal(k_vox, (B, 4, 16, 16), jnp.float32)
    seq = jax.random.normal(k_seq, (B, 1, max_length), jnp.float32)

    params = init_params(k_par, max_length=max_length, classes=classes)
    fused = prepare_fused_params(params)

    out = seq_peptide_forward(seq, fused)
    out = jax.block_until_ready(out)
    assert out.shape == (B, classes)

    # Tight check against a reference that applies the same bf16 rounding.
    ref_q = quantized_reference_forward(seq, fused)
    assert jnp.allclose(out, ref_q, atol=1e-3, rtol=1e-3)

    # Loose check against the exact f32 PyTorch-equivalent reference
    # (differences are bf16 weight/activation rounding + W2@W3 reassociation).
    ref = reference_forward(seq, params)
    assert jnp.allclose(out, ref, atol=5e-2, rtol=5e-2)

    print("KERNEL_OK")
</pallas_src>

<mosaic_0001>
module attributes {stable_mosaic.version = 11 : i64} {
  func.func @_seq_peptide_kernel(%arg0: i32, %arg1: memref<8x30xf32, #tpu.memory_space<vmem>>, %arg2: memref<30x512xbf16, #tpu.memory_space<vmem>>, %arg3: memref<1x512xf32, #tpu.memory_space<vmem>>, %arg4: memref<512x6xbf16, #tpu.memory_space<vmem>>, %arg5: memref<1x6xf32, #tpu.memory_space<vmem>>, %arg6: memref<8x6xf32, #tpu.memory_space<vmem>>) attributes {dimension_semantics = [#tpu.dimension_semantics<parallel>], iteration_bounds = array<i64: 1>, scalar_prefetch = 0 : i64, scratch_operands = 0 : i64, tpu.core_type = #tpu.core_type<tc>, window_params = [{transform_indices = @transform_0, window_bounds = array<i64: 8, 30>}, {pipeline_mode = #tpu.pipeline_mode<synchronous>, transform_indices = @transform_1, window_bounds = array<i64: 30, 512>}, {pipeline_mode = #tpu.pipeline_mode<synchronous>, transform_indices = @transform_2, window_bounds = array<i64: 1, 512>}, {pipeline_mode = #tpu.pipeline_mode<synchronous>, transform_indices = @transform_3, window_bounds = array<i64: 512, 6>}, {pipeline_mode = #tpu.pipeline_mode<synchronous>, transform_indices = @transform_4, window_bounds = array<i64: 1, 6>}, {transform_indices = @transform_5, window_bounds = array<i64: 8, 6>}]} {
    %c0 = arith.constant 0 : index
    %c0_0 = arith.constant 0 : index
    %0 = vector.load %arg1[%c0, %c0_0] : memref<8x30xf32, #tpu.memory_space<vmem>>, vector<8x30xf32>
    %1 = arith.truncf %0 : vector<8x30xf32> to vector<8x30xbf16>
    %c0_1 = arith.constant 0 : index
    %c0_2 = arith.constant 0 : index
    %2 = vector.load %arg2[%c0_1, %c0_2] : memref<30x512xbf16, #tpu.memory_space<vmem>>, vector<30x512xbf16>
    %cst = arith.constant dense<0.000000e+00> : vector<8x512xf32>
    %3 = tpu.matmul %1, %2, %cst {dimension_numbers = #tpu.dot_dimension_numbers<[1], [0], [0], [1], [0, 0, 1, 1], [], []>} : vector<8x30xbf16>, vector<30x512xbf16>, vector<8x512xf32> -> vector<8x512xf32>
    %c0_3 = arith.constant 0 : index
    %c0_4 = arith.constant 0 : index
    %4 = vector.load %arg3[%c0_3, %c0_4] : memref<1x512xf32, #tpu.memory_space<vmem>>, vector<1x512xf32>
    %5 = vector.broadcast %4 : vector<1x512xf32> to vector<8x512xf32>
    %6 = arith.addf %3, %5 : vector<8x512xf32>
    %cst_5 = arith.constant 0.000000e+00 : f32
    %7 = vector.broadcast %cst_5 : f32 to vector<8x512xf32>
    %8 = arith.maximumf %6, %7 : vector<8x512xf32>
    %9 = arith.truncf %8 : vector<8x512xf32> to vector<8x512xbf16>
    %c0_6 = arith.constant 0 : index
    %c0_7 = arith.constant 0 : index
    %10 = vector.load %arg4[%c0_6, %c0_7] : memref<512x6xbf16, #tpu.memory_space<vmem>>, vector<512x6xbf16>
    %cst_8 = arith.constant dense<0.000000e+00> : vector<8x6xf32>
    %11 = tpu.matmul %9, %10, %cst_8 {dimension_numbers = #tpu.dot_dimension_numbers<[1], [0], [0], [1], [0, 0, 1, 1], [], []>} : vector<8x512xbf16>, vector<512x6xbf16>, vector<8x6xf32> -> vector<8x6xf32>
    %c0_9 = arith.constant 0 : index
    %c0_10 = arith.constant 0 : index
    %12 = vector.load %arg5[%c0_9, %c0_10] : memref<1x6xf32, #tpu.memory_space<vmem>>, vector<1x6xf32>
    %13 = vector.broadcast %12 : vector<1x6xf32> to vector<8x6xf32>
    %14 = arith.addf %11, %13 : vector<8x6xf32>
    %c0_11 = arith.constant 0 : index
    %c0_12 = arith.constant 0 : index
    %15 = vector.load %arg6[%c0_11, %c0_12] : memref<8x6xf32, #tpu.memory_space<vmem>>, vector<8x6xf32>
    tpu.vector_store %arg6[%c0_11, %c0_12], %14 {strides = array<i32>} : memref<8x6xf32, #tpu.memory_space<vmem>>, vector<8x6xf32>,
    return
  }
  func.func @transform_0(%arg0: i32) -> (i32, i32) {
    %c0_i32 = arith.constant 0 : i32
    %c0_i32_0 = arith.constant 0 : i32
    return %arg0, %c0_i32 : i32, i32
  }
  func.func @transform_1(%arg0: i32) -> (i32, i32) {
    %c0_i32 = arith.constant 0 : i32
    %c0_i32_0 = arith.constant 0 : i32
    %c0_i32_1 = arith.constant 0 : i32
    return %c0_i32, %c0_i32_0 : i32, i32
  }
  func.func @transform_2(%arg0: i32) -> (i32, i32) {
    %c0_i32 = arith.constant 0 : i32
    %c0_i32_0 = arith.constant 0 : i32
    %c0_i32_1 = arith.constant 0 : i32
    return %c0_i32, %c0_i32_0 : i32, i32
  }
  func.func @transform_3(%arg0: i32) -> (i32, i32) {
    %c0_i32 = arith.constant 0 : i32
    %c0_i32_0 = arith.constant 0 : i32
    %c0_i32_1 = arith.constant 0 : i32
    return %c0_i32, %c0_i32_0 : i32, i32
  }
  func.func @transform_4(%arg0: i32) -> (i32, i32) {
    %c0_i32 = arith.constant 0 : i32
    %c0_i32_0 = arith.constant 0 : i32
    %c0_i32_1 = arith.constant 0 : i32
    return %c0_i32, %c0_i32_0 : i32, i32
  }
  func.func @transform_5(%arg0: i32) -> (i32, i32) {
    %c0_i32 = arith.constant 0 : i32
    %c0_i32_0 = arith.constant 0 : i32
    return %arg0, %c0_i32 : i32, i32
  }
}

</mosaic_0001>

<llo_original>
// kernel: seq_peptide_forward.1
$region0: #{seq_peptide_forward.1}
  #allocation0 [shape = 'u32[]', space=smem, size = 0x4, offset = 0x4, fixed_abs, tag = 'smem constant byte address 0x4 - core index']
  #allocation1 [shape = 'u32[144,128]{1,0:T(1,128)}', space=vmem, size = 0x12000, scoped, tag = 'internal scratch']
  %s0 = inlined_call_operand.vmem [shape: f32[2,30], index: 0, kind: input, shape index: {}]
  %s1 = inlined_call_operand.vmem [shape: bf16[30,512], index: 1, kind: input, shape index: {}]
  %s2 = inlined_call_operand.vmem [shape: f32[1,512], index: 2, kind: input, shape index: {}]
  %s3 = inlined_call_operand.vmem [shape: bf16[512,6], index: 3, kind: input, shape index: {}]
  %s4 = inlined_call_operand.vmem [shape: f32[1,6], index: 4, kind: input, shape index: {}]
  %s5 = inlined_call_operand.hbm [shape: f32[2,6], index: 5, kind: output, shape index: {}]
  %s6 = sld [smem:[#allocation0]]
  $region30: #{seq_peptide_forward.1} parent=0
    _
  %s8 = ssub.s32 1, %s6
  %s9 = scalar_select 0, %s8, %s6
  $region1: #{seq_peptide_forward.1} parent=0
    #allocation2 [shape = 'u8[4096]{0}', space=vmem, size = 0x1000, scoped, tag = 'output window, operand 0, single buffered']
    #allocation3 [shape = 's32[1]{0}', space=sflag, size = 0x4, scoped, tag = 'scoped memory for seq_peptide_forward.1']
    %10 = vsyncpa [#allocation3], 0
    // Predicated region
    $region2: #{seq_peptide_forward.1} parent=1 // pred_check
      _
    $region3: #{seq_peptide_forward.1} parent=1 // pred_check_branch
      %12 = sbr.rel (0) target = $region5
    $region4: #{seq_peptide_forward.1} parent=1 // pred_region
      _
    $region5: #{seq_peptide_forward.1} parent=1 // pred_fallthru
      _
    // Predicated region
    $region6: #{seq_peptide_forward.1} parent=1 // pred_check
      _
    $region7: #{seq_peptide_forward.1} parent=1 // pred_check_branch
      %14 = sbr.rel (0) target = $region9
    $region8: #{seq_peptide_forward.1} parent=1 // pred_region
      _
    $region9: #{seq_peptide_forward.1} parent=1 // pred_fallthru
      _
    // Predicated region
    $region10: #{seq_peptide_forward.1} parent=1 // pred_check
      _
    $region11: #{seq_peptide_forward.1} parent=1 // pred_check_branch
      %16 = sbr.rel (0) target = $region13
    $region12: #{seq_peptide_forward.1} parent=1 // pred_region
      _
    $region13: #{seq_peptide_forward.1} parent=1 // pred_fallthru
      _
    // Predicated region
    $region14: #{seq_peptide_forward.1} parent=1 // pred_check
      _
    $region15: #{seq_peptide_forward.1} parent=1 // pred_check_branch
      %18 = sbr.rel (0) target = $region17
    $region16: #{seq_peptide_forward.1} parent=1 // pred_region
      _
    $region17: #{seq_peptide_forward.1} parent=1 // pred_fallthru
      _
    // Predicated region
    $region18: #{seq_peptide_forward.1} parent=1 // pred_check
      _
    $region19: #{seq_peptide_forward.1} parent=1 // pred_check_branch
      %20 = sbr.rel (0) target = $region21
    $region20: #{seq_peptide_forward.1} parent=1 // pred_region
      _
    $region21: #{seq_peptide_forward.1} parent=1 // pred_fallthru
      _
    %v22 = vld [vmem:[%s0] sm:$0xff]
    %v23 = vpack.c.bf16 %v22, %v22
    %v24 = vld [vmem:[%s1] sm:$0xff]
    %v25 = vld [vmem:[%s1 + $0x8] sm:$0xff]
    %v26 = vld [vmem:[%s1 + $0x10] sm:$0xff]
    %v27 = vld [vmem:[%s1 + $0x18] sm:$0xff]
    %v28 = vld [vmem:[%s1 + $0x20] sm:$0xff]
    %v29 = vld [vmem:[%s1 + $0x28] sm:$0xff]
    %v30 = vld [vmem:[%s1 + $0x30] sm:$0x77]
    %v31 = vld [vmem:[%s1 + $0x38] sm:$0x77]
    %v32 = vld [vmem:[%s2] sm:$0xf]
    %v34 = vlaneseq
    %v35 = vshrl.u32 %v34, 7
    %v36 = vsub.s32 0, %v35
    %v37 = vrot.slane %v32, %v36
    %v38 = vlaneseq
    %v39 = vshrl.u32 %v38, 7
    %v40 = vsub.s32 1, %v39
    %v41 = vrot.slane %v32, %v40
    %v42 = vlaneseq
    %v43 = vshrl.u32 %v42, 7
    %v44 = vsub.s32 2, %v43
    %v45 = vrot.slane %v32, %v44
    %v46 = vlaneseq
    %v47 = vshrl.u32 %v46, 7
    %v48 = vsub.s32 3, %v47
    %v49 = vrot.slane %v32, %v48
    %v62 = vunpack.c.l.b16 %v24
    %v63 = vunpack.c.h.b16 %v24
    %v64 = vunpack.c.l.b16 %v25
    %v65 = vunpack.c.h.b16 %v25
    %v66 = vunpack.c.l.b16 %v26
    %v67 = vunpack.c.h.b16 %v26
    %v68 = vunpack.c.l.b16 %v27
    %v69 = vunpack.c.h.b16 %v27
    %v70 = vunpack.c.l.b16 %v28
    %v71 = vunpack.c.h.b16 %v28
    %v72 = vunpack.c.l.b16 %v29
    %v73 = vunpack.c.h.b16 %v29
    %v74 = vunpack.c.l.b16 %v30
    %v75 = vunpack.c.h.b16 %v30
    %v76 = vunpack.c.l.b16 %v31
    %v77 = vunpack.c.h.b16 %v31
    %v78 = vpack.c.b16 %v66, %v62
    %v79 = vpack.c.b16 %v67, %v63
    %v80 = vpack.c.b16 %v68, %v64
    %v81 = vpack.c.b16 %v69, %v65
    %v82 = vpack.c.b16 %v74, %v70
    %v83 = vpack.c.b16 %v75, %v71
    %v84 = vpack.c.b16 %v76, %v72
    %v85 = vpack.c.b16 %v77, %v73
    %vm90 = vcmask 244736
    %v92 = vsel %vm90, %v23, 0
    %vm94 = vcmask 1046528
    %v96 = vsel %vm94, %v82, 0
    %v99 = vsel %vm94, %v83, 0
    %v102 = vsel %vm94, %v84, 0
    %v105 = vsel %vm94, %v85, 0
    %107 = vmatprep.subr.bf16.mxu0 %v79
    %108 = vmatpush1.bf16.msra.mxu0 %v78
    %109 = vmatprep.subr.bf16.mxu0 %v99
    %110 = vmatpush1.bf16.msra.mxu0 %v96
    %111 = vmatprep.subr.bf16.mxu0 0
    %112 = vmatpush1.bf16.msra.mxu0 0
    %113 = vmatprep.subr.bf16.mxu0 0
    %114 = vmatpush1.bf16.msra.mxu0 0
    %115 = vmatprep.subr.bf16.mxu0 0
    %116 = vmatpush1.bf16.msra.mxu0 0
    %117 = vmatprep.subr.bf16.mxu0 0
    %118 = vmatpush1.bf16.msra.mxu0 0
    %119 = vmatprep.subr.bf16.mxu0 0
    %120 = vmatpush1.bf16.msra.mxu0 0
    %121 = vmatprep.subr.bf16.mxu0 0
    %122 = vmatpush1.bf16.msra.mxu0 0
    %123 = vmatprep.subr.bf16.mxu0 0
    %124 = vmatpush1.bf16.msra.mxu0 0
    %125 = vmatprep.subr.bf16.mxu0 0
    %126 = vmatpush1.bf16.msra.mxu0 0
    %127 = vmatprep.subr.bf16.mxu0 0
    %128 = vmatpush1.bf16.msra.mxu0 0
    %129 = vmatprep.subr.bf16.mxu0 0
    %130 = vmatpush1.bf16.msra.mxu0 0
    %131 = vmatprep.subr.bf16.mxu0 0
    %132 = vmatpush1.bf16.msra.mxu0 0
    %133 = vmatprep.subr.bf16.mxu0 0
    %134 = vmatpush1.bf16.msra.mxu0 0
    %135 = vmatprep.subr.bf16.mxu0 0
    %136 = vmatpush1.bf16.msra.mxu0 0
    %137 = vmatprep.subr.bf16.mxu0 0
    %138 = vmatpush1.bf16.msra.mxu0 0
    %139 = vmatprep.mubr.bf16.mxu0 0
    %140 = vmatmul.mubr.bf16.gmra.mrb[0].mxu0 %v92
    %v141 = vpop.f32.mrb[0].mxu0
    %v142 = vadd.f32 %v37, %v141
    %v143 = vpop.f32.mrb[0].mxu0
    %v144 = vadd.f32 %v41, %v143
    %v145 = vpop.f32.mrb[0].mxu0
    %v146 = vpop.f32.mrb[0].mxu0
    %147 = vdwg.mxu0
    %148 = vmatprep.subr.bf16.mxu0 %v81
    %149 = vmatpush1.bf16.msra.mxu0 %v80
    %150 = vmatprep.subr.bf16.mxu0 %v105
    %151 = vmatpush1.bf16.msra.mxu0 %v102
    %152 = vmatprep.subr.bf16.mxu0 0
    %153 = vmatpush1.bf16.msra.mxu0 0
    %154 = vmatprep.subr.bf16.mxu0 0
    %155 = vmatpush1.bf16.msra.mxu0 0
    %156 = vmatprep.subr.bf16.mxu0 0
    %157 = vmatpush1.bf16.msra.mxu0 0
    %158 = vmatprep.subr.bf16.mxu0 0
    %159 = vmatpush1.bf16.msra.mxu0 0
    %160 = vmatprep.subr.bf16.mxu0 0
    %161 = vmatpush1.bf16.msra.mxu0 0
    %162 = vmatprep.subr.bf16.mxu0 0
    %163 = vmatpush1.bf16.msra.mxu0 0
    %164 = vmatprep.subr.bf16.mxu0 0
    %165 = vmatpush1.bf16.msra.mxu0 0
    %166 = vmatprep.subr.bf16.mxu0 0
    %167 = vmatpush1.bf16.msra.mxu0 0
    %168 = vmatprep.subr.bf16.mxu0 0
    %169 = vmatpush1.bf16.msra.mxu0 0
    %170 = vmatprep.subr.bf16.mxu0 0
    %171 = vmatpush1.bf16.msra.mxu0 0
    %172 = vmatprep.subr.bf16.mxu0 0
    %173 = vmatpush1.bf16.msra.mxu0 0
    %174 = vmatprep.subr.bf16.mxu0 0
    %175 = vmatpush1.bf16.msra.mxu0 0
    %176 = vmatprep.subr.bf16.mxu0 0
    %177 = vmatpush1.bf16.msra.mxu0 0
    %178 = vmatprep.subr.bf16.mxu0 0
    %179 = vmatpush1.bf16.msra.mxu0 0
    %180 = vmatprep.mubr.bf16.mxu0 0
    %181 = vmatmul.mubr.bf16.gmra.mrb[0].mxu0 %v92
    %v182 = vpop.f32.mrb[0].mxu0
    %v183 = vadd.f32 %v45, %v182
    %v184 = vpop.f32.mrb[0].mxu0
    %v185 = vadd.f32 %v49, %v184
    %v186 = vpop.f32.mrb[0].mxu0
    %v187 = vpop.f32.mrb[0].mxu0
    %188 = vdwg.mxu0
    %v189 = vmax.f32 %v142, 0.0
    %v190 = vmax.f32 %v144, 0.0
    %v191 = vmax.f32 %v183, 0.0
    %v192 = vmax.f32 %v185, 0.0
    %v193 = vpack.c.bf16 %v189, %v189
    %v194 = vpack.c.bf16 %v190, %v190
    %v195 = vpack.c.bf16 %v191, %v191
    %v196 = vpack.c.bf16 %v192, %v192
    %v197 = vld [vmem:[%s3] sm:$0xf]
    %v198 = vld [vmem:[%s3 + $0x4] sm:$0xf]
    %v199 = vld [vmem:[%s3 + $0x8] sm:$0xf]
    %v200 = vld [vmem:[%s3 + $0xc] sm:$0xf]
    %v201 = vld [vmem:[%s3 + $0x10] sm:$0xf]
    %v202 = vld [vmem:[%s3 + $0x14] sm:$0xf]
    %v203 = vld [vmem:[%s3 + $0x18] sm:$0xf]
    %v204 = vld [vmem:[%s3 + $0x1c] sm:$0xf]
    %v205 = vld [vmem:[%s3 + $0x20] sm:$0xf]
    %v206 = vld [vmem:[%s3 + $0x24] sm:$0xf]
    %v207 = vld [vmem:[%s3 + $0x28] sm:$0xf]
    %v208 = vld [vmem:[%s3 + $0x2c] sm:$0xf]
    %v209 = vld [vmem:[%s3 + $0x30] sm:$0xf]
    %v210 = vld [vmem:[%s3 + $0x34] sm:$0xf]
    %v211 = vld [vmem:[%s3 + $0x38] sm:$0xf]
    %v212 = vld [vmem:[%s3 + $0x3c] sm:$0xf]
    %v213 = vld [vmem:[%s3 + $0x40] sm:$0xf]
    %v214 = vld [vmem:[%s3 + $0x44] sm:$0xf]
    %v215 = vld [vmem:[%s3 + $0x48] sm:$0xf]
    %v216 = vld [vmem:[%s3 + $0x4c] sm:$0xf]
    %v217 = vld [vmem:[%s3 + $0x50] sm:$0xf]
    %v218 = vld [vmem:[%s3 + $0x54] sm:$0xf]
    %v219 = vld [vmem:[%s3 + $0x58] sm:$0xf]
    %v220 = vld [vmem:[%s3 + $0x5c] sm:$0xf]
    %v221 = vld [vmem:[%s3 + $0x60] sm:$0xf]
    %v222 = vld [vmem:[%s3 + $0x64] sm:$0xf]
    %v223 = vld [vmem:[%s3 + $0x68] sm:$0xf]
    %v224 = vld [vmem:[%s3 + $0x6c] sm:$0xf]
    %v225 = vld [vmem:[%s3 + $0x70] sm:$0xf]
    %v226 = vld [vmem:[%s3 + $0x74] sm:$0xf]
    %v227 = vld [vmem:[%s3 + $0x78] sm:$0xf]
    %v228 = vld [vmem:[%s3 + $0x7c] sm:$0xf]
    %v229 = vld [vmem:[%s3 + $0x80] sm:$0xf]
    %v230 = vld [vmem:[%s3 + $0x84] sm:$0xf]
    %v231 = vld [vmem:[%s3 + $0x88] sm:$0xf]
    %v232 = vld [vmem:[%s3 + $0x8c] sm:$0xf]
    %v233 = vld [vmem:[%s3 + $0x90] sm:$0xf]
    %v234 = vld [vmem:[%s3 + $0x94] sm:$0xf]
    %v235 = vld [vmem:[%s3 + $0x98] sm:$0xf]
    %v236 = vld [vmem:[%s3 + $0x9c] sm:$0xf]
    %v237 = vld [vmem:[%s3 + $0xa0] sm:$0xf]
    %v238 = vld [vmem:[%s3 + $0xa4] sm:$0xf]
    %v239 = vld [vmem:[%s3 + $0xa8] sm:$0xf]
    %v240 = vld [vmem:[%s3 + $0xac] sm:$0xf]
    %v241 = vld [vmem:[%s3 + $0xb0] sm:$0xf]
    %v242 = vld [vmem:[%s3 + $0xb4] sm:$0xf]
    %v243 = vld [vmem:[%s3 + $0xb8] sm:$0xf]
    %v244 = vld [vmem:[%s3 + $0xbc] sm:$0xf]
    %v245 = vld [vmem:[%s3 + $0xc0] sm:$0xf]
    %v246 = vld [vmem:[%s3 + $0xc4] sm:$0xf]
    %v247 = vld [vmem:[%s3 + $0xc8] sm:$0xf]
    %v248 = vld [vmem:[%s3 + $0xcc] sm:$0xf]
    %v249 = vld [vmem:[%s3 + $0xd0] sm:$0xf]
    %v250 = vld [vmem:[%s3 + $0xd4] sm:$0xf]
    %v251 = vld [vmem:[%s3 + $0xd8] sm:$0xf]
    %v252 = vld [vmem:[%s3 + $0xdc] sm:$0xf]
    %v253 = vld [vmem:[%s3 + $0xe0] sm:$0xf]
    %v254 = vld [vmem:[%s3 + $0xe4] sm:$0xf]
    %v255 = vld [vmem:[%s3 + $0xe8] sm:$0xf]
    %v256 = vld [vmem:[%s3 + $0xec] sm:$0xf]
    %v257 = vld [vmem:[%s3 + $0xf0] sm:$0xf]
    %v258 = vld [vmem:[%s3 + $0xf4] sm:$0xf]
    %v259 = vld [vmem:[%s3 + $0xf8] sm:$0xf]
    %v260 = vld [vmem:[%s3 + $0xfc] sm:$0xf]
    %v261 = vld [vmem:[%s4] sm:$0x1]
    %v263 = vlaneseq
    %v264 = vshrl.u32 %v263, 7
    %v265 = vsub.s32 0, %v264
    %v266 = vrot.slane %v261, %v265
    %v332 = vunpack.c.l.b16 %v197
    %v333 = vunpack.c.l.b16 %v198
    %v334 = vunpack.c.l.b16 %v199
    %v335 = vunpack.c.l.b16 %v200
    %v336 = vunpack.c.l.b16 %v201
    %v337 = vunpack.c.l.b16 %v202
    %v338 = vunpack.c.l.b16 %v203
    %v339 = vunpack.c.l.b16 %v204
    %v340 = vunpack.c.l.b16 %v205
    %v341 = vunpack.c.l.b16 %v206
    %v342 = vunpack.c.l.b16 %v207
    %v343 = vunpack.c.l.b16 %v208
    %v344 = vunpack.c.l.b16 %v209
    %v345 = vunpack.c.l.b16 %v210
    %v346 = vunpack.c.l.b16 %v211
    %v347 = vunpack.c.l.b16 %v212
    %v348 = vunpack.c.l.b16 %v213
    %v349 = vunpack.c.l.b16 %v214
    %v350 = vunpack.c.l.b16 %v215
    %v351 = vunpack.c.l.b16 %v216
    %v352 = vunpack.c.l.b16 %v217
    %v353 = vunpack.c.l.b16 %v218
    %v354 = vunpack.c.l.b16 %v219
    %v355 = vunpack.c.l.b16 %v220
    %v356 = vunpack.c.l.b16 %v221
    %v357 = vunpack.c.l.b16 %v222
    %v358 = vunpack.c.l.b16 %v223
    %v359 = vunpack.c.l.b16 %v224
    %v360 = vunpack.c.l.b16 %v225
    %v361 = vunpack.c.l.b16 %v226
    %v362 = vunpack.c.l.b16 %v227
    %v363 = vunpack.c.l.b16 %v228
    %v364 = vunpack.c.l.b16 %v229
    %v365 = vunpack.c.l.b16 %v230
    %v366 = vunpack.c.l.b16 %v231
    %v367 = vunpack.c.l.b16 %v232
    %v368 = vunpack.c.l.b16 %v233
    %v369 = vunpack.c.l.b16 %v234
    %v370 = vunpack.c.l.b16 %v235
    %v371 = vunpack.c.l.b16 %v236
    %v372 = vunpack.c.l.b16 %v237
    %v373 = vunpack.c.l.b16 %v238
    %v374 = vunpack.c.l.b16 %v239
    %v375 = vunpack.c.l.b16 %v240
    %v376 = vunpack.c.l.b16 %v241
    %v377 = vunpack.c.l.b16 %v242
    %v378 = vunpack.c.l.b16 %v243
    %v379 = vunpack.c.l.b16 %v244
    %v380 = vunpack.c.l.b16 %v245
    %v381 = vunpack.c.l.b16 %v246
    %v382 = vunpack.c.l.b16 %v247
    %v383 = vunpack.c.l.b16 %v248
    %v384 = vunpack.c.l.b16 %v249
    %v385 = vunpack.c.l.b16 %v250
    %v386 = vunpack.c.l.b16 %v251
    %v387 = vunpack.c.l.b16 %v252
    %v388 = vunpack.c.l.b16 %v253
    %v389 = vunpack.c.l.b16 %v254
    %v390 = vunpack.c.l.b16 %v255
    %v391 = vunpack.c.l.b16 %v256
    %v392 = vunpack.c.l.b16 %v257
    %v393 = vunpack.c.l.b16 %v258
    %v394 = vunpack.c.l.b16 %v259
    %v395 = vunpack.c.l.b16 %v260
    %v396 = vpack.c.b16 %v333, %v332
    %v397 = vpack.c.b16 %v335, %v334
    %v398 = vpack.c.b16 %v337, %v336
    %v399 = vpack.c.b16 %v339, %v338
    %v400 = vpack.c.b16 %v341, %v340
    %v401 = vpack.c.b16 %v343, %v342
    %v402 = vpack.c.b16 %v345, %v344
    %v403 = vpack.c.b16 %v347, %v346
    %v404 = vpack.c.b16 %v349, %v348
    %v405 = vpack.c.b16 %v351, %v350
    %v406 = vpack.c.b16 %v353, %v352
    %v407 = vpack.c.b16 %v355, %v354
    %v408 = vpack.c.b16 %v357, %v356
    %v409 = vpack.c.b16 %v359, %v358
    %v410 = vpack.c.b16 %v361, %v360
    %v411 = vpack.c.b16 %v363, %v362
    %v412 = vpack.c.b16 %v365, %v364
    %v413 = vpack.c.b16 %v367, %v366
    %v414 = vpack.c.b16 %v369, %v368
    %v415 = vpack.c.b16 %v371, %v370
    %v416 = vpack.c.b16 %v373, %v372
    %v417 = vpack.c.b16 %v375, %v374
    %v418 = vpack.c.b16 %v377, %v376
    %v419 = vpack.c.b16 %v379, %v378
    %v420 = vpack.c.b16 %v381, %v380
    %v421 = vpack.c.b16 %v383, %v382
    %v422 = vpack.c.b16 %v385, %v384
    %v423 = vpack.c.b16 %v387, %v386
    %v424 = vpack.c.b16 %v389, %v388
    %v425 = vpack.c.b16 %v391, %v390
    %v426 = vpack.c.b16 %v393, %v392
    %v427 = vpack.c.b16 %v395, %v394
    %460 = vmatprep.subr.bf16.mxu0 0
    %461 = vmatpush1.bf16.msra.mxu0 %v396
    %462 = vmatprep.subr.bf16.mxu0 0
    %463 = vmatpush1.bf16.msra.mxu0 %v397
    %464 = vmatprep.subr.bf16.mxu0 0
    %465 = vmatpush1.bf16.msra.mxu0 %v398
    %466 = vmatprep.subr.bf16.mxu0 0
    %467 = vmatpush1.bf16.msra.mxu0 %v399
    %468 = vmatprep.subr.bf16.mxu0 0
    %469 = vmatpush1.bf16.msra.mxu0 %v400
    %470 = vmatprep.subr.bf16.mxu0 0
    %471 = vmatpush1.bf16.msra.mxu0 %v401
    %472 = vmatprep.subr.bf16.mxu0 0
    %473 = vmatpush1.bf16.msra.mxu0 %v402
    %474 = vmatprep.subr.bf16.mxu0 0
    %475 = vmatpush1.bf16.msra.mxu0 %v403
    %476 = vmatprep.subr.bf16.mxu0 0
    %477 = vmatpush1.bf16.msra.mxu0 %v404
    %478 = vmatprep.subr.bf16.mxu0 0
    %479 = vmatpush1.bf16.msra.mxu0 %v405
    %480 = vmatprep.subr.bf16.mxu0 0
    %481 = vmatpush1.bf16.msra.mxu0 %v406
    %482 = vmatprep.subr.bf16.mxu0 0
    %483 = vmatpush1.bf16.msra.mxu0 %v407
    %484 = vmatprep.subr.bf16.mxu0 0
    %485 = vmatpush1.bf16.msra.mxu0 %v408
    %486 = vmatprep.subr.bf16.mxu0 0
    %487 = vmatpush1.bf16.msra.mxu0 %v409
    %488 = vmatprep.subr.bf16.mxu0 0
    %489 = vmatpush1.bf16.msra.mxu0 %v410
    %490 = vmatprep.subr.bf16.mxu0 0
    %491 = vmatpush1.bf16.msra.mxu0 %v411
    %492 = vmatprep.mubr.bf16.mxu0 %v194
    %493 = vmatmul.mubr.bf16.gmra.mrb[0].mxu0 %v193
    %v494 = vpop.f32.mrb[0].mxu0
    %v495 = vadd.f32 %v266, %v494
    %v496 = vpop.f32.mrb[0].mxu0
    %v497 = vpop.f32.mrb[0].mxu0
    %v498 = vpop.f32.mrb[0].mxu0
    %499 = vdwg.mxu0
    %500 = vmatprep.subr.bf16.mxu0 0
    %501 = vmatpush1.bf16.msra.mxu0 %v412
    %502 = vmatprep.subr.bf16.mxu0 0
    %503 = vmatpush1.bf16.msra.mxu0 %v413
    %504 = vmatprep.subr.bf16.mxu0 0
    %505 = vmatpush1.bf16.msra.mxu0 %v414
    %506 = vmatprep.subr.bf16.mxu0 0
    %507 = vmatpush1.bf16.msra.mxu0 %v415
    %508 = vmatprep.subr.bf16.mxu0 0
    %509 = vmatpush1.bf16.msra.mxu0 %v416
    %510 = vmatprep.subr.bf16.mxu0 0
    %511 = vmatpush1.bf16.msra.mxu0 %v417
    %512 = vmatprep.subr.bf16.mxu0 0
    %513 = vmatpush1.bf16.msra.mxu0 %v418
    %514 = vmatprep.subr.bf16.mxu0 0
    %515 = vmatpush1.bf16.msra.mxu0 %v419
    %516 = vmatprep.subr.bf16.mxu0 0
    %517 = vmatpush1.bf16.msra.mxu0 %v420
    %518 = vmatprep.subr.bf16.mxu0 0
    %519 = vmatpush1.bf16.msra.mxu0 %v421
    %520 = vmatprep.subr.bf16.mxu0 0
    %521 = vmatpush1.bf16.msra.mxu0 %v422
    %522 = vmatprep.subr.bf16.mxu0 0
    %523 = vmatpush1.bf16.msra.mxu0 %v423
    %524 = vmatprep.subr.bf16.mxu0 0
    %525 = vmatpush1.bf16.msra.mxu0 %v424
    %526 = vmatprep.subr.bf16.mxu0 0
    %527 = vmatpush1.bf16.msra.mxu0 %v425
    %528 = vmatprep.subr.bf16.mxu0 0
    %529 = vmatpush1.bf16.msra.mxu0 %v426
    %530 = vmatprep.subr.bf16.mxu0 0
    %531 = vmatpush1.bf16.msra.mxu0 %v427
    %532 = vmatprep.mubr.bf16.mxu0 %v196
    %533 = vmatmul.mubr.bf16.gmra.mrb[0].mxu0 %v195
    %v534 = vpop.f32.mrb[0].mxu0
    %v535 = vadd.f32 %v495, %v534
    %v536 = vpop.f32.mrb[0].mxu0
    %v537 = vpop.f32.mrb[0].mxu0
    %v538 = vpop.f32.mrb[0].mxu0
    %539 = vdwg.mxu0
    %vm540 = vcmask 48128
    %541 = vst.msk [vmem:[#allocation2] sm:$0xff] %vm540, %v535
    // Predicated region
    $region22: #{seq_peptide_forward.1} parent=1 // pred_check
      _
    $region23: #{seq_peptide_forward.1} parent=1 // pred_check_branch
      %543 = sbr.rel (0) target = $region25
    $region24: #{seq_peptide_forward.1} parent=1 // pred_region
      %s545 = ssub.s32 128, 32
      %546 = vsyncadd [#allocation3], %s545
      %s547 = sshll.u32 [#allocation2], 4
      %s548 = int_to_ptr.vmem [resolvable:$true] %s547
      %553 = dma.vmem_to_hbm [thread:$0]  %s548, 32, %s5, [#allocation3], 32, 32, 2
    $region25: #{seq_peptide_forward.1} parent=1 // pred_fallthru
      _
    // Predicated region
    $region26: #{seq_peptide_forward.1} parent=1 // pred_check
      _
    $region27: #{seq_peptide_forward.1} parent=1 // pred_check_branch
      %555 = sbr.rel (0) target = $region29
    $region28: #{seq_peptide_forward.1} parent=1 // pred_region
      %556 = dma.done [#allocation3], 128
    $region29: #{seq_peptide_forward.1} parent=1 // pred_fallthru
      _
    %557 = vsyncpa [#allocation3], 1

</llo_original>
